<compile_context>
chip_gen: v7x
topology: tpu7x:2x2x1
jax: 0.10.0
libtpu: 0.0.40
codegen_flags: <defaults>
</compile_context>

<pallas_src>
import jax
import jax.numpy as jnp
from jax import lax
from jax.experimental import pallas as pl
from jax.experimental.pallas import tpu as pltpu

_LANE = 128   # vreg lane width
_SUB = 8      # f32 sublane count


def _round_up(x, m):
    return (x + m - 1) // m * m


def make_qnet_forward(input_size, hidden_size, output_size, max_batch_tile=1024):
    """Build (pack_params, forward) for a Linear_QNet of the given sizes.

    pack_params(w1, b1, w2, b2) -> single padded f32 slab (call ONCE at init).
    forward(x, slab)            -> (B, output_size) Q-values (jitted, reusable).
    """
    IN, H, OUT = input_size, hidden_size, output_size
    MAX_TB = max_batch_tile
    LANE_W = max(_round_up(H, _LANE), _round_up(OUT, _LANE))   # 128 here

    # Param-slab row layout; every section starts on an 8-sublane boundary.
    R_W1 = 0                                  # rows [R_W1, R_W1+IN)     : W1^T (IN x H valid)
    R_B1 = _round_up(IN, _SUB)                # row  R_B1                : b1   (H valid lanes)
    R_W2 = R_B1 + _SUB                        # rows [R_W2, R_W2+LANE_W) : W2^T (H x OUT valid)
    R_B2 = R_W2 + LANE_W                      # row  R_B2                : b2   (OUT valid lanes)
    ROWS = R_B2 + _SUB                        # 160 rows -> 80 KiB f32 slab

    def pack_params(w1, b1, w2, b2):
        """One-time packing of PyTorch-layout params ((H,IN),(H,),(OUT,H),(OUT,))."""
        slab = jnp.zeros((ROWS, LANE_W), jnp.float32)
        slab = slab.at[R_W1:R_W1 + IN, 0:H].set(jnp.asarray(w1, jnp.float32).T)
        slab = slab.at[R_B1, 0:H].set(jnp.asarray(b1, jnp.float32))
        slab = slab.at[R_W2:R_W2 + H, 0:OUT].set(jnp.asarray(w2, jnp.float32).T)
        slab = slab.at[R_B2, 0:OUT].set(jnp.asarray(b2, jnp.float32))
        return slab

    def kernel(x_ref, p_ref, o_ref):
        # x_ref: (TB, IN) f32   p_ref: (ROWS, LANE_W) f32   o_ref: (TB, LANE_W) f32
        x = x_ref[...]
        w1t = p_ref[R_W1:R_W1 + IN, :]          # (IN, LANE_W), zero beyond H lanes
        b1 = p_ref[R_B1:R_B1 + 1, :]            # (1, LANE_W)
        w2t = p_ref[R_W2:R_W2 + LANE_W, :]      # (LANE_W, LANE_W), zero beyond (H, OUT)
        b2 = p_ref[R_B2:R_B2 + 1, :]            # (1, LANE_W)

        h = jnp.dot(x, w1t, preferred_element_type=jnp.float32,
                    precision=lax.Precision.HIGHEST) + b1
        h = jnp.maximum(h, 0.0)                 # ReLU, f32 VPU epilogue
        y = jnp.dot(h, w2t, preferred_element_type=jnp.float32,
                    precision=lax.Precision.HIGHEST) + b2
        o_ref[...] = y                          # lane-dense (TB, 128) store

    @jax.jit
    def forward(x, slab):
        B = x.shape[0]
        if x.dtype != jnp.float32:
            x = x.astype(jnp.float32)

        # Adaptive batch tile (decided at trace time from the static batch size):
        #  - B <= 256: one tile of round_up(B, 8) rows (min sublane granule, no pad pass).
        #  - B  > 256: tiles of up to MAX_TB rows, but at least 2 grid steps so the
        #    "parallel" axis can shard across v7x's two TensorCores.
        rows = max(_SUB, _round_up(B, _SUB))
        if rows <= 256:
            tb = rows
        else:
            n_tiles = max(2, pl.cdiv(rows, MAX_TB))
            tb = _round_up(pl.cdiv(rows, n_tiles), _SUB)
        grid = pl.cdiv(B, tb)

        out = pl.pallas_call(
            kernel,
            out_shape=jax.ShapeDtypeStruct((B, LANE_W), jnp.float32),
            grid_spec=pltpu.PrefetchScalarGridSpec(
                num_scalar_prefetch=0,
                grid=(grid,),
                in_specs=[
                    # x batch tile (ragged last block is masked by Pallas).
                    pl.BlockSpec((tb, IN), lambda i: (i, 0)),
                    # Whole param slab; constant block index -> fetched once, reused.
                    pl.BlockSpec((ROWS, LANE_W), lambda i: (0, 0)),
                ],
                out_specs=pl.BlockSpec((tb, LANE_W), lambda i: (i, 0)),
            ),
            compiler_params=pltpu.CompilerParams(
                dimension_semantics=("parallel",)),   # batch tiles shard over TCs (v7x)
        )(x, slab)
        return out[:, :OUT]

    return pack_params, forward


def _init_params(key, input_size, hidden_size, output_size):
    """Deterministic PyTorch-style (uniform +/- 1/sqrt(fan_in)) init."""
    k1, k2, k3, k4 = jax.random.split(key, 4)
    bound1 = 1.0 / jnp.sqrt(input_size)
    bound2 = 1.0 / jnp.sqrt(hidden_size)
    w1 = jax.random.uniform(k1, (hidden_size, input_size), jnp.float32,
                            -bound1, bound1)
    b1 = jax.random.uniform(k2, (hidden_size,), jnp.float32, -bound1, bound1)
    w2 = jax.random.uniform(k3, (output_size, hidden_size), jnp.float32,
                            -bound2, bound2)
    b2 = jax.random.uniform(k4, (output_size,), jnp.float32, -bound2, bound2)
    return w1, b1, w2, b2


if __name__ == "__main__":
    key = jax.random.PRNGKey(0)
    batch, input_size, hidden_size, output_size = 2, 16, 32, 4

    kx, kp, kx2 = jax.random.split(key, 3)
    x = jax.random.normal(kx, (batch, input_size), jnp.float32)
    w1, b1, w2, b2 = _init_params(kp, input_size, hidden_size, output_size)

    pack_params, qnet_forward = make_qnet_forward(
        input_size, hidden_size, output_size, max_batch_tile=1024)

    # One-time packing (hoisted out of the per-call path).
    slab = jax.block_until_ready(pack_params(w1, b1, w2, b2))

    def ref_fwd(xv):
        return jnp.maximum(xv @ w1.T + b1, 0.0) @ w2.T + b2

    # 1) Tiny inference batch (B=2 -> single 8-row tile, no wrapper padding pass).
    out = jax.block_until_ready(qnet_forward(x, slab))
    assert out.shape == (batch, output_size)
    assert jnp.allclose(out, ref_fwd(x), atol=1e-5, rtol=1e-5)

    # 2) Ragged multi-tile batch (non-multiple-of-tile B -> exercises edge-block
    #    store masking and the >=2-step path used for v7x dual-TC sharding).
    x_big = jax.random.normal(kx2, (300, input_size), jnp.float32)
    out_big = jax.block_until_ready(qnet_forward(x_big, slab))
    assert out_big.shape == (300, output_size)
    assert jnp.allclose(out_big, ref_fwd(x_big), atol=1e-5, rtol=1e-5)

    # TODO(synk): save()/load() checkpointing is host-side I/O, not kernel work.
    print("KERNEL_OK")
</pallas_src>

<mosaic_0001>
module attributes {stable_mosaic.version = 11 : i64} {
  func.func @kernel(%arg0: i32, %arg1: memref<8x16xf32, #tpu.memory_space<vmem>>, %arg2: memref<160x128xf32, #tpu.memory_space<vmem>>, %arg3: memref<8x128xf32, #tpu.memory_space<vmem>>) attributes {dimension_semantics = [#tpu.dimension_semantics<parallel>], iteration_bounds = array<i64: 1>, scalar_prefetch = 0 : i64, scratch_operands = 0 : i64, tpu.core_type = #tpu.core_type<tc>, window_params = [{transform_indices = @transform_0, window_bounds = array<i64: 8, 16>}, {pipeline_mode = #tpu.pipeline_mode<synchronous>, transform_indices = @transform_1, window_bounds = array<i64: 160, 128>}, {transform_indices = @transform_2, window_bounds = array<i64: 8, 128>}]} {
    %c0 = arith.constant 0 : index
    %c0_0 = arith.constant 0 : index
    %0 = vector.load %arg1[%c0, %c0_0] : memref<8x16xf32, #tpu.memory_space<vmem>>, vector<8x16xf32>
    %c0_1 = arith.constant 0 : index
    %c0_2 = arith.constant 0 : index
    %1 = vector.load %arg2[%c0_1, %c0_2] : memref<160x128xf32, #tpu.memory_space<vmem>>, vector<16x128xf32>
    %c16 = arith.constant 16 : index
    %c0_3 = arith.constant 0 : index
    %2 = vector.load %arg2[%c16, %c0_3] : memref<160x128xf32, #tpu.memory_space<vmem>>, vector<1x128xf32>
    %c24 = arith.constant 24 : index
    %c0_4 = arith.constant 0 : index
    %3 = vector.load %arg2[%c24, %c0_4] : memref<160x128xf32, #tpu.memory_space<vmem>>, vector<128x128xf32>
    %c152 = arith.constant 152 : index
    %c0_5 = arith.constant 0 : index
    %4 = vector.load %arg2[%c152, %c0_5] : memref<160x128xf32, #tpu.memory_space<vmem>>, vector<1x128xf32>
    %cst = arith.constant dense<0.000000e+00> : vector<8x128xf32>
    %5 = tpu.matmul %0, %1, %cst {dimension_numbers = #tpu.dot_dimension_numbers<[1], [0], [0], [1], [0, 0, 1, 1], [], []>, precision = #tpu.contract_precision<fp32>} : vector<8x16xf32>, vector<16x128xf32>, vector<8x128xf32> -> vector<8x128xf32>
    %6 = vector.broadcast %2 : vector<1x128xf32> to vector<8x128xf32>
    %7 = arith.addf %5, %6 : vector<8x128xf32>
    %cst_6 = arith.constant 0.000000e+00 : f32
    %8 = vector.broadcast %cst_6 : f32 to vector<8x128xf32>
    %9 = arith.maximumf %7, %8 : vector<8x128xf32>
    %cst_7 = arith.constant dense<0.000000e+00> : vector<8x128xf32>
    %10 = tpu.matmul %9, %3, %cst_7 {dimension_numbers = #tpu.dot_dimension_numbers<[1], [0], [0], [1], [0, 0, 1, 1], [], []>, precision = #tpu.contract_precision<fp32>} : vector<8x128xf32>, vector<128x128xf32>, vector<8x128xf32> -> vector<8x128xf32>
    %11 = vector.broadcast %4 : vector<1x128xf32> to vector<8x128xf32>
    %12 = arith.addf %10, %11 : vector<8x128xf32>
    %c0_8 = arith.constant 0 : index
    %c0_9 = arith.constant 0 : index
    %13 = vector.load %arg3[%c0_8, %c0_9] : memref<8x128xf32, #tpu.memory_space<vmem>>, vector<8x128xf32>
    tpu.vector_store %arg3[%c0_8, %c0_9], %12 {strides = array<i32>} : memref<8x128xf32, #tpu.memory_space<vmem>>, vector<8x128xf32>,
    return
  }
  func.func @transform_0(%arg0: i32) -> (i32, i32) {
    %c0_i32 = arith.constant 0 : i32
    %c0_i32_0 = arith.constant 0 : i32
    return %arg0, %c0_i32 : i32, i32
  }
  func.func @transform_1(%arg0: i32) -> (i32, i32) {
    %c0_i32 = arith.constant 0 : i32
    %c0_i32_0 = arith.constant 0 : i32
    %c0_i32_1 = arith.constant 0 : i32
    return %c0_i32, %c0_i32_0 : i32, i32
  }
  func.func @transform_2(%arg0: i32) -> (i32, i32) {
    %c0_i32 = arith.constant 0 : i32
    %c0_i32_0 = arith.constant 0 : i32
    return %arg0, %c0_i32 : i32, i32
  }
}

</mosaic_0001>

<llo_original>
// kernel: forward.1
$region0: #{forward.1}
  #allocation0 [shape = 'u32[]', space=smem, size = 0x4, offset = 0x4, fixed_abs, tag = 'smem constant byte address 0x4 - core index']
  #allocation1 [shape = 'u32[144,128]{1,0:T(1,128)}', space=vmem, size = 0x12000, scoped, tag = 'internal scratch']
  %s0 = inlined_call_operand.hbm [shape: f32[2,16], index: 0, kind: input, shape index: {}]
  %s1 = inlined_call_operand.hbm [shape: f32[160,128], index: 1, kind: input, shape index: {}]
  %s2 = inlined_call_operand.hbm [shape: f32[2,128], index: 2, kind: output, shape index: {}]
  %s3 = sld [smem:[#allocation0]]
  $region26: #{forward.1} parent=0
    _
  %s5 = ssub.s32 1, %s3
  %s6 = scalar_select 0, %s5, %s3
  $region1: #{forward.1} parent=0
    #allocation2 [shape = 'u8[4096]{0}', space=vmem, size = 0x1000, scoped, tag = 'input window, operand 0, single buffered']
    #allocation3 [shape = 's32[1]{0}', space=sflag, size = 0x4, scoped, tag = 'scoped memory for forward.1']
    #allocation4 [shape = 's32[1]{0}', space=sflag, size = 0x4, scoped, tag = 'scoped memory for forward.1']
    #allocation5 [shape = 'u8[81920]{0}', space=vmem, size = 0x14000, scoped, tag = 'input window, operand 1, single buffered']
    #allocation6 [shape = 's32[1]{0}', space=sflag, size = 0x4, scoped, tag = 'scoped memory for forward.1']
    #allocation7 [shape = 'u8[4096]{0}', space=vmem, size = 0x1000, scoped, tag = 'output window, operand 0, single buffered']
    %7 = vsyncpa [#allocation3], 0
    %8 = vsyncpa [#allocation6], 0
    %9 = vsyncpa [#allocation4], 0
    // Predicated region
    $region2: #{forward.1} parent=1 // pred_check
      _
    $region3: #{forward.1} parent=1 // pred_check_branch
      %11 = sbr.rel (0) target = $region5
    $region4: #{forward.1} parent=1 // pred_region
      %s13 = ssub.s32 128, 32
      %14 = vsyncadd [#allocation3], %s13
      %s15 = sshll.u32 [#allocation2], 4
      %s16 = int_to_ptr.vmem [resolvable:$true] %s15
      %21 = dma.hbm_to_vmem [thread:$0]  %s0, 32, %s16, [#allocation3], 32, 32, 2
    $region5: #{forward.1} parent=1 // pred_fallthru
      _
    // Predicated region
    $region6: #{forward.1} parent=1 // pred_check
      _
    $region7: #{forward.1} parent=1 // pred_check_branch
      %23 = sbr.rel (0) target = $region9
    $region8: #{forward.1} parent=1 // pred_region
      %s25 = ssub.s32 2560, 2560
      %26 = vsyncadd [#allocation6], %s25
      %s27 = sshll.u32 [#allocation5], 4
      %s28 = int_to_ptr.vmem [resolvable:$true] %s27
      %33 = dma.hbm_to_vmem [thread:$0]  %s1, 2560, %s28, [#allocation6], 128, 128, 8
    $region9: #{forward.1} parent=1 // pred_fallthru
      _
    // Predicated region
    $region10: #{forward.1} parent=1 // pred_check
      _
    $region11: #{forward.1} parent=1 // pred_check_branch
      %35 = sbr.rel (0) target = $region13
    $region12: #{forward.1} parent=1 // pred_region
      %36 = dma.done [#allocation3], 128
    $region13: #{forward.1} parent=1 // pred_fallthru
      _
    // Predicated region
    $region14: #{forward.1} parent=1 // pred_check
      _
    $region15: #{forward.1} parent=1 // pred_check_branch
      %38 = sbr.rel (0) target = $region17
    $region16: #{forward.1} parent=1 // pred_region
      %39 = dma.done [#allocation6], 2560
    $region17: #{forward.1} parent=1 // pred_fallthru
      _
    %v40 = vld [vmem:[#allocation2] sm:$0xff]
    %v41 = vld [vmem:[#allocation5] sm:$0xff]
    %v42 = vld [vmem:[#allocation5 + $0x8] sm:$0xff]
    %v43 = vld [vmem:[#allocation5 + $0x10] sm:$0x1]
    %v44 = vld [vmem:[#allocation5 + $0x18] sm:$0xff]
    %v45 = vld [vmem:[#allocation5 + $0x20] sm:$0xff]
    %v46 = vld [vmem:[#allocation5 + $0x28] sm:$0xff]
    %v47 = vld [vmem:[#allocation5 + $0x30] sm:$0xff]
    %v48 = vld [vmem:[#allocation5 + $0x38] sm:$0xff]
    %v49 = vld [vmem:[#allocation5 + $0x40] sm:$0xff]
    %v50 = vld [vmem:[#allocation5 + $0x48] sm:$0xff]
    %v51 = vld [vmem:[#allocation5 + $0x50] sm:$0xff]
    %v52 = vld [vmem:[#allocation5 + $0x58] sm:$0xff]
    %v53 = vld [vmem:[#allocation5 + $0x60] sm:$0xff]
    %v54 = vld [vmem:[#allocation5 + $0x68] sm:$0xff]
    %v55 = vld [vmem:[#allocation5 + $0x70] sm:$0xff]
    %v56 = vld [vmem:[#allocation5 + $0x78] sm:$0xff]
    %v57 = vld [vmem:[#allocation5 + $0x80] sm:$0xff]
    %v58 = vld [vmem:[#allocation5 + $0x88] sm:$0xff]
    %v59 = vld [vmem:[#allocation5 + $0x90] sm:$0xff]
    %v60 = vld [vmem:[#allocation5 + $0x98] sm:$0x1]
    %v61 = vlaneseq
    %v62 = vshrl.u32 %v61, 7
    %v63 = vsub.s32 0, %v62
    %v64 = vrot.slane %v43, %v63
    %vm65 = vcmask 130048
    %v67 = vsel %vm65, %v40, 0
    %69 = vmatprep.subr.mxu0 0.0
    %v70 = vand.u32 %v41, 4294901760
    %71 = vmatpush1.msra.mxu0 %v70
    %72 = vmatprep.subr.mxu0 0.0
    %v73 = vand.u32 %v42, 4294901760
    %74 = vmatpush1.msra.mxu0 %v73
    %75 = vmatprep.subr.mxu0 0.0
    %76 = vmatpush1.msra.mxu0 0.0
    %77 = vmatprep.subr.mxu0 0.0
    %78 = vmatpush1.msra.mxu0 0.0
    %79 = vmatprep.subr.mxu0 0.0
    %80 = vmatpush1.msra.mxu0 0.0
    %81 = vmatprep.subr.mxu0 0.0
    %82 = vmatpush1.msra.mxu0 0.0
    %83 = vmatprep.subr.mxu0 0.0
    %84 = vmatpush1.msra.mxu0 0.0
    %85 = vmatprep.subr.mxu0 0.0
    %86 = vmatpush1.msra.mxu0 0.0
    %87 = vmatprep.subr.mxu0 0.0
    %88 = vmatpush1.msra.mxu0 0.0
    %89 = vmatprep.subr.mxu0 0.0
    %90 = vmatpush1.msra.mxu0 0.0
    %91 = vmatprep.subr.mxu0 0.0
    %92 = vmatpush1.msra.mxu0 0.0
    %93 = vmatprep.subr.mxu0 0.0
    %94 = vmatpush1.msra.mxu0 0.0
    %95 = vmatprep.subr.mxu0 0.0
    %96 = vmatpush1.msra.mxu0 0.0
    %97 = vmatprep.subr.mxu0 0.0
    %98 = vmatpush1.msra.mxu0 0.0
    %99 = vmatprep.subr.mxu0 0.0
    %100 = vmatpush1.msra.mxu0 0.0
    %101 = vmatprep.subr.mxu0 0.0
    %102 = vmatpush1.msra.mxu0 0.0
    %103 = vmatprep.subr.mxu0 0.0
    %104 = vmatpush1.msra.mxu0 0.0
    %105 = vmatprep.subr.mxu0 0.0
    %106 = vmatpush1.msra.mxu0 0.0
    %107 = vmatprep.subr.mxu0 0.0
    %108 = vmatpush1.msra.mxu0 0.0
    %109 = vmatprep.subr.mxu0 0.0
    %110 = vmatpush1.msra.mxu0 0.0
    %111 = vmatprep.subr.mxu0 0.0
    %112 = vmatpush1.msra.mxu0 0.0
    %113 = vmatprep.subr.mxu0 0.0
    %114 = vmatpush1.msra.mxu0 0.0
    %115 = vmatprep.subr.mxu0 0.0
    %116 = vmatpush1.msra.mxu0 0.0
    %117 = vmatprep.subr.mxu0 0.0
    %118 = vmatpush1.msra.mxu0 0.0
    %119 = vmatprep.subr.mxu0 0.0
    %120 = vmatpush1.msra.mxu0 0.0
    %121 = vmatprep.subr.mxu0 0.0
    %122 = vmatpush1.msra.mxu0 0.0
    %123 = vmatprep.subr.mxu0 0.0
    %124 = vmatpush1.msra.mxu0 0.0
    %125 = vmatprep.subr.mxu0 0.0
    %126 = vmatpush1.msra.mxu0 0.0
    %127 = vmatprep.subr.mxu0 0.0
    %128 = vmatpush1.msra.mxu0 0.0
    %129 = vmatprep.subr.mxu0 0.0
    %130 = vmatpush1.msra.mxu0 0.0
    %131 = vmatprep.subr.mxu0 0.0
    %132 = vmatpush1.msra.mxu0 0.0
    %133 = vmatprep.subr.mxu0 0.0
    %134 = vmatpush1.msra.mxu0 0.0
    %135 = vmatprep.mubr.f32.mxu0 0.0
    %v136 = vand.u32 %v67, 4294901760
    %v137 = vsub.f32 %v67, %v136
    %v138 = vand.u32 %v137, 4294901760
    %v139 = vsub.f32 %v137, %v138
    %v140 = vand.u32 %v139, 4294901760
    %141 = vmatmul.mubr.f32.gmra.mrb[0].mxu0 %v140
    %v142 = vpop.f32.mrb[0].mxu0
    %v143 = vadd.f32 %v64, %v142
    %v144 = vpop.f32.mrb[0].mxu0
    %145 = vdwg.mxu0
    %146 = vmatprep.subr.mxu0 0.0
    %v147 = vand.u32 %v41, 4294901760
    %v148 = vsub.f32 %v41, %v147
    %v149 = vand.u32 %v148, 4294901760
    %v150 = vsub.f32 %v148, %v149
    %v151 = vand.u32 %v150, 4294901760
    %152 = vmatpush1.msra.mxu0 %v151
    %153 = vmatprep.subr.mxu0 0.0
    %v154 = vand.u32 %v42, 4294901760
    %v155 = vsub.f32 %v42, %v154
    %v156 = vand.u32 %v155, 4294901760
    %v157 = vsub.f32 %v155, %v156
    %v158 = vand.u32 %v157, 4294901760
    %159 = vmatpush1.msra.mxu0 %v158
    %160 = vmatprep.subr.mxu0 0.0
    %161 = vmatpush1.msra.mxu0 0.0
    %162 = vmatprep.subr.mxu0 0.0
    %163 = vmatpush1.msra.mxu0 0.0
    %164 = vmatprep.subr.mxu0 0.0
    %165 = vmatpush1.msra.mxu0 0.0
    %166 = vmatprep.subr.mxu0 0.0
    %167 = vmatpush1.msra.mxu0 0.0
    %168 = vmatprep.subr.mxu0 0.0
    %169 = vmatpush1.msra.mxu0 0.0
    %170 = vmatprep.subr.mxu0 0.0
    %171 = vmatpush1.msra.mxu0 0.0
    %172 = vmatprep.subr.mxu0 0.0
    %173 = vmatpush1.msra.mxu0 0.0
    %174 = vmatprep.subr.mxu0 0.0
    %175 = vmatpush1.msra.mxu0 0.0
    %176 = vmatprep.subr.mxu0 0.0
    %177 = vmatpush1.msra.mxu0 0.0
    %178 = vmatprep.subr.mxu0 0.0
    %179 = vmatpush1.msra.mxu0 0.0
    %180 = vmatprep.subr.mxu0 0.0
    %181 = vmatpush1.msra.mxu0 0.0
    %182 = vmatprep.subr.mxu0 0.0
    %183 = vmatpush1.msra.mxu0 0.0
    %184 = vmatprep.subr.mxu0 0.0
    %185 = vmatpush1.msra.mxu0 0.0
    %186 = vmatprep.subr.mxu0 0.0
    %187 = vmatpush1.msra.mxu0 0.0
    %188 = vmatprep.subr.mxu0 0.0
    %189 = vmatpush1.msra.mxu0 0.0
    %190 = vmatprep.subr.mxu0 0.0
    %191 = vmatpush1.msra.mxu0 0.0
    %192 = vmatprep.subr.mxu0 0.0
    %193 = vmatpush1.msra.mxu0 0.0
    %194 = vmatprep.subr.mxu0 0.0
    %195 = vmatpush1.msra.mxu0 0.0
    %196 = vmatprep.subr.mxu0 0.0
    %197 = vmatpush1.msra.mxu0 0.0
    %198 = vmatprep.subr.mxu0 0.0
    %199 = vmatpush1.msra.mxu0 0.0
    %200 = vmatprep.subr.mxu0 0.0
    %201 = vmatpush1.msra.mxu0 0.0
    %202 = vmatprep.subr.mxu0 0.0
    %203 = vmatpush1.msra.mxu0 0.0
    %204 = vmatprep.subr.mxu0 0.0
    %205 = vmatpush1.msra.mxu0 0.0
    %206 = vmatprep.subr.mxu0 0.0
    %207 = vmatpush1.msra.mxu0 0.0
    %208 = vmatprep.subr.mxu0 0.0
    %209 = vmatpush1.msra.mxu0 0.0
    %210 = vmatprep.subr.mxu0 0.0
    %211 = vmatpush1.msra.mxu0 0.0
    %212 = vmatprep.subr.mxu0 0.0
    %213 = vmatpush1.msra.mxu0 0.0
    %214 = vmatprep.subr.mxu0 0.0
    %215 = vmatpush1.msra.mxu0 0.0
    %216 = vmatprep.subr.mxu0 0.0
    %217 = vmatpush1.msra.mxu0 0.0
    %218 = vmatprep.subr.mxu0 0.0
    %219 = vmatpush1.msra.mxu0 0.0
    %220 = vmatprep.mubr.f32.mxu0 0.0
    %v221 = vand.u32 %v67, 4294901760
    %222 = vmatmul.mubr.f32.gmra.mrb[0].mxu0 %v221
    %v223 = vpop.f32.mrb[0].mxu0
    %v224 = vadd.f32 %v143, %v223
    %v225 = vpop.f32.mrb[0].mxu0
    %226 = vdwg.mxu0
    %227 = vmatprep.subr.mxu0 0.0
    %v228 = vand.u32 %v41, 4294901760
    %v229 = vsub.f32 %v41, %v228
    %230 = vmatpush1.msra.mxu0 %v229
    %231 = vmatprep.subr.mxu0 0.0
    %v232 = vand.u32 %v42, 4294901760
    %v233 = vsub.f32 %v42, %v232
    %234 = vmatpush1.msra.mxu0 %v233
    %235 = vmatprep.subr.mxu0 0.0
    %236 = vmatpush1.msra.mxu0 0.0
    %237 = vmatprep.subr.mxu0 0.0
    %238 = vmatpush1.msra.mxu0 0.0
    %239 = vmatprep.subr.mxu0 0.0
    %240 = vmatpush1.msra.mxu0 0.0
    %241 = vmatprep.subr.mxu0 0.0
    %242 = vmatpush1.msra.mxu0 0.0
    %243 = vmatprep.subr.mxu0 0.0
    %244 = vmatpush1.msra.mxu0 0.0
    %245 = vmatprep.subr.mxu0 0.0
    %246 = vmatpush1.msra.mxu0 0.0
    %247 = vmatprep.subr.mxu0 0.0
    %248 = vmatpush1.msra.mxu0 0.0
    %249 = vmatprep.subr.mxu0 0.0
    %250 = vmatpush1.msra.mxu0 0.0
    %251 = vmatprep.subr.mxu0 0.0
    %252 = vmatpush1.msra.mxu0 0.0
    %253 = vmatprep.subr.mxu0 0.0
    %254 = vmatpush1.msra.mxu0 0.0
    %255 = vmatprep.subr.mxu0 0.0
    %256 = vmatpush1.msra.mxu0 0.0
    %257 = vmatprep.subr.mxu0 0.0
    %258 = vmatpush1.msra.mxu0 0.0
    %259 = vmatprep.subr.mxu0 0.0
    %260 = vmatpush1.msra.mxu0 0.0
    %261 = vmatprep.subr.mxu0 0.0
    %262 = vmatpush1.msra.mxu0 0.0
    %263 = vmatprep.subr.mxu0 0.0
    %264 = vmatpush1.msra.mxu0 0.0
    %265 = vmatprep.subr.mxu0 0.0
    %266 = vmatpush1.msra.mxu0 0.0
    %267 = vmatprep.subr.mxu0 0.0
    %268 = vmatpush1.msra.mxu0 0.0
    %269 = vmatprep.subr.mxu0 0.0
    %270 = vmatpush1.msra.mxu0 0.0
    %271 = vmatprep.subr.mxu0 0.0
    %272 = vmatpush1.msra.mxu0 0.0
    %273 = vmatprep.subr.mxu0 0.0
    %274 = vmatpush1.msra.mxu0 0.0
    %275 = vmatprep.subr.mxu0 0.0
    %276 = vmatpush1.msra.mxu0 0.0
    %277 = vmatprep.subr.mxu0 0.0
    %278 = vmatpush1.msra.mxu0 0.0
    %279 = vmatprep.subr.mxu0 0.0
    %280 = vmatpush1.msra.mxu0 0.0
    %281 = vmatprep.subr.mxu0 0.0
    %282 = vmatpush1.msra.mxu0 0.0
    %283 = vmatprep.subr.mxu0 0.0
    %284 = vmatpush1.msra.mxu0 0.0
    %285 = vmatprep.subr.mxu0 0.0
    %286 = vmatpush1.msra.mxu0 0.0
    %287 = vmatprep.subr.mxu0 0.0
    %288 = vmatpush1.msra.mxu0 0.0
    %289 = vmatprep.subr.mxu0 0.0
    %290 = vmatpush1.msra.mxu0 0.0
    %291 = vmatprep.subr.mxu0 0.0
    %292 = vmatpush1.msra.mxu0 0.0
    %293 = vmatprep.subr.mxu0 0.0
    %294 = vmatpush1.msra.mxu0 0.0
    %295 = vmatprep.mubr.f32.mxu0 0.0
    %v296 = vand.u32 %v67, 4294901760
    %v297 = vsub.f32 %v67, %v296
    %298 = vmatmul.mubr.f32.gmra.mrb[0].mxu0 %v297
    %v299 = vpop.f32.mrb[0].mxu0
    %v300 = vadd.f32 %v224, %v299
    %v301 = vpop.f32.mrb[0].mxu0
    %302 = vdwg.mxu0
    %303 = vmatprep.subr.mxu0 0.0
    %v304 = vand.u32 %v41, 4294901760
    %305 = vmatpush1.msra.mxu0 %v304
    %306 = vmatprep.subr.mxu0 0.0
    %v307 = vand.u32 %v42, 4294901760
    %308 = vmatpush1.msra.mxu0 %v307
    %309 = vmatprep.subr.mxu0 0.0
    %310 = vmatpush1.msra.mxu0 0.0
    %311 = vmatprep.subr.mxu0 0.0
    %312 = vmatpush1.msra.mxu0 0.0
    %313 = vmatprep.subr.mxu0 0.0
    %314 = vmatpush1.msra.mxu0 0.0
    %315 = vmatprep.subr.mxu0 0.0
    %316 = vmatpush1.msra.mxu0 0.0
    %317 = vmatprep.subr.mxu0 0.0
    %318 = vmatpush1.msra.mxu0 0.0
    %319 = vmatprep.subr.mxu0 0.0
    %320 = vmatpush1.msra.mxu0 0.0
    %321 = vmatprep.subr.mxu0 0.0
    %322 = vmatpush1.msra.mxu0 0.0
    %323 = vmatprep.subr.mxu0 0.0
    %324 = vmatpush1.msra.mxu0 0.0
    %325 = vmatprep.subr.mxu0 0.0
    %326 = vmatpush1.msra.mxu0 0.0
    %327 = vmatprep.subr.mxu0 0.0
    %328 = vmatpush1.msra.mxu0 0.0
    %329 = vmatprep.subr.mxu0 0.0
    %330 = vmatpush1.msra.mxu0 0.0
    %331 = vmatprep.subr.mxu0 0.0
    %332 = vmatpush1.msra.mxu0 0.0
    %333 = vmatprep.subr.mxu0 0.0
    %334 = vmatpush1.msra.mxu0 0.0
    %335 = vmatprep.subr.mxu0 0.0
    %336 = vmatpush1.msra.mxu0 0.0
    %337 = vmatprep.subr.mxu0 0.0
    %338 = vmatpush1.msra.mxu0 0.0
    %339 = vmatprep.subr.mxu0 0.0
    %340 = vmatpush1.msra.mxu0 0.0
    %341 = vmatprep.subr.mxu0 0.0
    %342 = vmatpush1.msra.mxu0 0.0
    %343 = vmatprep.subr.mxu0 0.0
    %344 = vmatpush1.msra.mxu0 0.0
    %345 = vmatprep.subr.mxu0 0.0
    %346 = vmatpush1.msra.mxu0 0.0
    %347 = vmatprep.subr.mxu0 0.0
    %348 = vmatpush1.msra.mxu0 0.0
    %349 = vmatprep.subr.mxu0 0.0
    %350 = vmatpush1.msra.mxu0 0.0
    %351 = vmatprep.subr.mxu0 0.0
    %352 = vmatpush1.msra.mxu0 0.0
    %353 = vmatprep.subr.mxu0 0.0
    %354 = vmatpush1.msra.mxu0 0.0
    %355 = vmatprep.subr.mxu0 0.0
    %356 = vmatpush1.msra.mxu0 0.0
    %357 = vmatprep.subr.mxu0 0.0
    %358 = vmatpush1.msra.mxu0 0.0
    %359 = vmatprep.subr.mxu0 0.0
    %360 = vmatpush1.msra.mxu0 0.0
    %361 = vmatprep.subr.mxu0 0.0
    %362 = vmatpush1.msra.mxu0 0.0
    %363 = vmatprep.subr.mxu0 0.0
    %364 = vmatpush1.msra.mxu0 0.0
    %365 = vmatprep.subr.mxu0 0.0
    %366 = vmatpush1.msra.mxu0 0.0
    %367 = vmatprep.subr.mxu0 0.0
    %368 = vmatpush1.msra.mxu0 0.0
    %369 = vmatprep.mubr.f32.mxu0 0.0
    %v370 = vand.u32 %v67, 4294901760
    %v371 = vsub.f32 %v67, %v370
    %v372 = vand.u32 %v371, 4294901760
    %373 = vmatmul.mubr.f32.gmra.mrb[0].mxu0 %v372
    %v374 = vpop.f32.mrb[0].mxu0
    %v375 = vadd.f32 %v300, %v374
    %v376 = vpop.f32.mrb[0].mxu0
    %377 = vdwg.mxu0
    %378 = vmatprep.subr.mxu0 0.0
    %v379 = vand.u32 %v41, 4294901760
    %v380 = vsub.f32 %v41, %v379
    %v381 = vand.u32 %v380, 4294901760
    %382 = vmatpush1.msra.mxu0 %v381
    %383 = vmatprep.subr.mxu0 0.0
    %v384 = vand.u32 %v42, 4294901760
    %v385 = vsub.f32 %v42, %v384
    %v386 = vand.u32 %v385, 4294901760
    %387 = vmatpush1.msra.mxu0 %v386
    %388 = vmatprep.subr.mxu0 0.0
    %389 = vmatpush1.msra.mxu0 0.0
    %390 = vmatprep.subr.mxu0 0.0
    %391 = vmatpush1.msra.mxu0 0.0
    %392 = vmatprep.subr.mxu0 0.0
    %393 = vmatpush1.msra.mxu0 0.0
    %394 = vmatprep.subr.mxu0 0.0
    %395 = vmatpush1.msra.mxu0 0.0
    %396 = vmatprep.subr.mxu0 0.0
    %397 = vmatpush1.msra.mxu0 0.0
    %398 = vmatprep.subr.mxu0 0.0
    %399 = vmatpush1.msra.mxu0 0.0
    %400 = vmatprep.subr.mxu0 0.0
    %401 = vmatpush1.msra.mxu0 0.0
    %402 = vmatprep.subr.mxu0 0.0
    %403 = vmatpush1.msra.mxu0 0.0
    %404 = vmatprep.subr.mxu0 0.0
    %405 = vmatpush1.msra.mxu0 0.0
    %406 = vmatprep.subr.mxu0 0.0
    %407 = vmatpush1.msra.mxu0 0.0
    %408 = vmatprep.subr.mxu0 0.0
    %409 = vmatpush1.msra.mxu0 0.0
    %410 = vmatprep.subr.mxu0 0.0
    %411 = vmatpush1.msra.mxu0 0.0
    %412 = vmatprep.subr.mxu0 0.0
    %413 = vmatpush1.msra.mxu0 0.0
    %414 = vmatprep.subr.mxu0 0.0
    %415 = vmatpush1.msra.mxu0 0.0
    %416 = vmatprep.subr.mxu0 0.0
    %417 = vmatpush1.msra.mxu0 0.0
    %418 = vmatprep.subr.mxu0 0.0
    %419 = vmatpush1.msra.mxu0 0.0
    %420 = vmatprep.subr.mxu0 0.0
    %421 = vmatpush1.msra.mxu0 0.0
    %422 = vmatprep.subr.mxu0 0.0
    %423 = vmatpush1.msra.mxu0 0.0
    %424 = vmatprep.subr.mxu0 0.0
    %425 = vmatpush1.msra.mxu0 0.0
    %426 = vmatprep.subr.mxu0 0.0
    %427 = vmatpush1.msra.mxu0 0.0
    %428 = vmatprep.subr.mxu0 0.0
    %429 = vmatpush1.msra.mxu0 0.0
    %430 = vmatprep.subr.mxu0 0.0
    %431 = vmatpush1.msra.mxu0 0.0
    %432 = vmatprep.subr.mxu0 0.0
    %433 = vmatpush1.msra.mxu0 0.0
    %434 = vmatprep.subr.mxu0 0.0
    %435 = vmatpush1.msra.mxu0 0.0
    %436 = vmatprep.subr.mxu0 0.0
    %437 = vmatpush1.msra.mxu0 0.0
    %438 = vmatprep.subr.mxu0 0.0
    %439 = vmatpush1.msra.mxu0 0.0
    %440 = vmatprep.subr.mxu0 0.0
    %441 = vmatpush1.msra.mxu0 0.0
    %442 = vmatprep.subr.mxu0 0.0
    %443 = vmatpush1.msra.mxu0 0.0
    %444 = vmatprep.subr.mxu0 0.0
    %445 = vmatpush1.msra.mxu0 0.0
    %446 = vmatprep.subr.mxu0 0.0
    %447 = vmatpush1.msra.mxu0 0.0
    %448 = vmatprep.mubr.f32.mxu0 0.0
    %v449 = vand.u32 %v67, 4294901760
    %450 = vmatmul.mubr.f32.gmra.mrb[0].mxu0 %v449
    %v451 = vpop.f32.mrb[0].mxu0
    %v452 = vadd.f32 %v375, %v451
    %v453 = vpop.f32.mrb[0].mxu0
    %454 = vdwg.mxu0
    %455 = vmatprep.subr.mxu0 0.0
    %v456 = vand.u32 %v41, 4294901760
    %457 = vmatpush1.msra.mxu0 %v456
    %458 = vmatprep.subr.mxu0 0.0
    %v459 = vand.u32 %v42, 4294901760
    %460 = vmatpush1.msra.mxu0 %v459
    %461 = vmatprep.subr.mxu0 0.0
    %462 = vmatpush1.msra.mxu0 0.0
    %463 = vmatprep.subr.mxu0 0.0
    %464 = vmatpush1.msra.mxu0 0.0
    %465 = vmatprep.subr.mxu0 0.0
    %466 = vmatpush1.msra.mxu0 0.0
    %467 = vmatprep.subr.mxu0 0.0
    %468 = vmatpush1.msra.mxu0 0.0
    %469 = vmatprep.subr.mxu0 0.0
    %470 = vmatpush1.msra.mxu0 0.0
    %471 = vmatprep.subr.mxu0 0.0
    %472 = vmatpush1.msra.mxu0 0.0
    %473 = vmatprep.subr.mxu0 0.0
    %474 = vmatpush1.msra.mxu0 0.0
    %475 = vmatprep.subr.mxu0 0.0
    %476 = vmatpush1.msra.mxu0 0.0
    %477 = vmatprep.subr.mxu0 0.0
    %478 = vmatpush1.msra.mxu0 0.0
    %479 = vmatprep.subr.mxu0 0.0
    %480 = vmatpush1.msra.mxu0 0.0
    %481 = vmatprep.subr.mxu0 0.0
    %482 = vmatpush1.msra.mxu0 0.0
    %483 = vmatprep.subr.mxu0 0.0
    %484 = vmatpush1.msra.mxu0 0.0
    %485 = vmatprep.subr.mxu0 0.0
    %486 = vmatpush1.msra.mxu0 0.0
    %487 = vmatprep.subr.mxu0 0.0
    %488 = vmatpush1.msra.mxu0 0.0
    %489 = vmatprep.subr.mxu0 0.0
    %490 = vmatpush1.msra.mxu0 0.0
    %491 = vmatprep.subr.mxu0 0.0
    %492 = vmatpush1.msra.mxu0 0.0
    %493 = vmatprep.subr.mxu0 0.0
    %494 = vmatpush1.msra.mxu0 0.0
    %495 = vmatprep.subr.mxu0 0.0
    %496 = vmatpush1.msra.mxu0 0.0
    %497 = vmatprep.subr.mxu0 0.0
    %498 = vmatpush1.msra.mxu0 0.0
    %499 = vmatprep.subr.mxu0 0.0
    %500 = vmatpush1.msra.mxu0 0.0
    %501 = vmatprep.subr.mxu0 0.0
    %502 = vmatpush1.msra.mxu0 0.0
    %503 = vmatprep.subr.mxu0 0.0
    %504 = vmatpush1.msra.mxu0 0.0
    %505 = vmatprep.subr.mxu0 0.0
    %506 = vmatpush1.msra.mxu0 0.0
    %507 = vmatprep.subr.mxu0 0.0
    %508 = vmatpush1.msra.mxu0 0.0
    %509 = vmatprep.subr.mxu0 0.0
    %510 = vmatpush1.msra.mxu0 0.0
    %511 = vmatprep.subr.mxu0 0.0
    %512 = vmatpush1.msra.mxu0 0.0
    %513 = vmatprep.subr.mxu0 0.0
    %514 = vmatpush1.msra.mxu0 0.0
    %515 = vmatprep.subr.mxu0 0.0
    %516 = vmatpush1.msra.mxu0 0.0
    %517 = vmatprep.subr.mxu0 0.0
    %518 = vmatpush1.msra.mxu0 0.0
    %519 = vmatprep.subr.mxu0 0.0
    %520 = vmatpush1.msra.mxu0 0.0
    %521 = vmatprep.mubr.f32.mxu0 0.0
    %v522 = vand.u32 %v67, 4294901760
    %523 = vmatmul.mubr.f32.gmra.mrb[0].mxu0 %v522
    %v524 = vpop.f32.mrb[0].mxu0
    %v525 = vadd.f32 %v452, %v524
    %v526 = vpop.f32.mrb[0].mxu0
    %527 = vdwg.mxu0
    %v528 = vmax.f32 %v525, 0.0
    %v529 = vlaneseq
    %v530 = vshrl.u32 %v529, 7
    %v531 = vsub.s32 0, %v530
    %v532 = vrot.slane %v60, %v531
    %533 = vmatprep.subr.mxu0 0.0
    %v534 = vand.u32 %v44, 4294901760
    %535 = vmatpush1.msra.mxu0 %v534
    %536 = vmatprep.subr.mxu0 0.0
    %v537 = vand.u32 %v45, 4294901760
    %538 = vmatpush1.msra.mxu0 %v537
    %539 = vmatprep.subr.mxu0 0.0
    %v540 = vand.u32 %v46, 4294901760
    %541 = vmatpush1.msra.mxu0 %v540
    %542 = vmatprep.subr.mxu0 0.0
    %v543 = vand.u32 %v47, 4294901760
    %544 = vmatpush1.msra.mxu0 %v543
    %545 = vmatprep.subr.mxu0 0.0
    %v546 = vand.u32 %v48, 4294901760
    %547 = vmatpush1.msra.mxu0 %v546
    %548 = vmatprep.subr.mxu0 0.0
    %v549 = vand.u32 %v49, 4294901760
    %550 = vmatpush1.msra.mxu0 %v549
    %551 = vmatprep.subr.mxu0 0.0
    %v552 = vand.u32 %v50, 4294901760
    %553 = vmatpush1.msra.mxu0 %v552
    %554 = vmatprep.subr.mxu0 0.0
    %v555 = vand.u32 %v51, 4294901760
    %556 = vmatpush1.msra.mxu0 %v555
    %557 = vmatprep.subr.mxu0 0.0
    %v558 = vand.u32 %v52, 4294901760
    %559 = vmatpush1.msra.mxu0 %v558
    %560 = vmatprep.subr.mxu0 0.0
    %v561 = vand.u32 %v53, 4294901760
    %562 = vmatpush1.msra.mxu0 %v561
    %563 = vmatprep.subr.mxu0 0.0
    %v564 = vand.u32 %v54, 4294901760
    %565 = vmatpush1.msra.mxu0 %v564
    %566 = vmatprep.subr.mxu0 0.0
    %v567 = vand.u32 %v55, 4294901760
    %568 = vmatpush1.msra.mxu0 %v567
    %569 = vmatprep.subr.mxu0 0.0
    %v570 = vand.u32 %v56, 4294901760
    %571 = vmatpush1.msra.mxu0 %v570
    %572 = vmatprep.subr.mxu0 0.0
    %v573 = vand.u32 %v57, 4294901760
    %574 = vmatpush1.msra.mxu0 %v573
    %575 = vmatprep.subr.mxu0 0.0
    %v576 = vand.u32 %v58, 4294901760
    %577 = vmatpush1.msra.mxu0 %v576
    %578 = vmatprep.subr.mxu0 0.0
    %v579 = vand.u32 %v59, 4294901760
    %580 = vmatpush1.msra.mxu0 %v579
    %581 = vmatprep.subr.mxu0 0.0
    %582 = vmatpush1.msra.mxu0 0.0
    %583 = vmatprep.subr.mxu0 0.0
    %584 = vmatpush1.msra.mxu0 0.0
    %585 = vmatprep.subr.mxu0 0.0
    %586 = vmatpush1.msra.mxu0 0.0
    %587 = vmatprep.subr.mxu0 0.0
    %588 = vmatpush1.msra.mxu0 0.0
    %589 = vmatprep.subr.mxu0 0.0
    %590 = vmatpush1.msra.mxu0 0.0
    %591 = vmatprep.subr.mxu0 0.0
    %592 = vmatpush1.msra.mxu0 0.0
    %593 = vmatprep.subr.mxu0 0.0
    %594 = vmatpush1.msra.mxu0 0.0
    %595 = vmatprep.subr.mxu0 0.0
    %596 = vmatpush1.msra.mxu0 0.0
    %597 = vmatprep.subr.mxu0 0.0
    %598 = vmatpush1.msra.mxu0 0.0
    %599 = vmatprep.subr.mxu0 0.0
    %600 = vmatpush1.msra.mxu0 0.0
    %601 = vmatprep.subr.mxu0 0.0
    %602 = vmatpush1.msra.mxu0 0.0
    %603 = vmatprep.subr.mxu0 0.0
    %604 = vmatpush1.msra.mxu0 0.0
    %605 = vmatprep.subr.mxu0 0.0
    %606 = vmatpush1.msra.mxu0 0.0
    %607 = vmatprep.subr.mxu0 0.0
    %608 = vmatpush1.msra.mxu0 0.0
    %609 = vmatprep.subr.mxu0 0.0
    %610 = vmatpush1.msra.mxu0 0.0
    %611 = vmatprep.subr.mxu0 0.0
    %612 = vmatpush1.msra.mxu0 0.0
    %613 = vmatprep.mubr.f32.mxu0 0.0
    %v614 = vand.u32 %v528, 4294901760
    %v615 = vsub.f32 %v528, %v614
    %v616 = vand.u32 %v615, 4294901760
    %v617 = vsub.f32 %v615, %v616
    %v618 = vand.u32 %v617, 4294901760
    %619 = vmatmul.mubr.f32.gmra.mrb[0].mxu0 %v618
    %v620 = vpop.f32.mrb[0].mxu0
    %v621 = vadd.f32 %v532, %v620
    %v622 = vpop.f32.mrb[0].mxu0
    %623 = vdwg.mxu0
    %624 = vmatprep.subr.mxu0 0.0
    %v625 = vand.u32 %v44, 4294901760
    %v626 = vsub.f32 %v44, %v625
    %v627 = vand.u32 %v626, 4294901760
    %v628 = vsub.f32 %v626, %v627
    %v629 = vand.u32 %v628, 4294901760
    %630 = vmatpush1.msra.mxu0 %v629
    %631 = vmatprep.subr.mxu0 0.0
    %v632 = vand.u32 %v45, 4294901760
    %v633 = vsub.f32 %v45, %v632
    %v634 = vand.u32 %v633, 4294901760
    %v635 = vsub.f32 %v633, %v634
    %v636 = vand.u32 %v635, 4294901760
    %637 = vmatpush1.msra.mxu0 %v636
    %638 = vmatprep.subr.mxu0 0.0
    %v639 = vand.u32 %v46, 4294901760
    %v640 = vsub.f32 %v46, %v639
    %v641 = vand.u32 %v640, 4294901760
    %v642 = vsub.f32 %v640, %v641
    %v643 = vand.u32 %v642, 4294901760
    %644 = vmatpush1.msra.mxu0 %v643
    %645 = vmatprep.subr.mxu0 0.0
    %v646 = vand.u32 %v47, 4294901760
    %v647 = vsub.f32 %v47, %v646
    %v648 = vand.u32 %v647, 4294901760
    %v649 = vsub.f32 %v647, %v648
    %v650 = vand.u32 %v649, 4294901760
    %651 = vmatpush1.msra.mxu0 %v650
    %652 = vmatprep.subr.mxu0 0.0
    %v653 = vand.u32 %v48, 4294901760
    %v654 = vsub.f32 %v48, %v653
    %v655 = vand.u32 %v654, 4294901760
    %v656 = vsub.f32 %v654, %v655
    %v657 = vand.u32 %v656, 4294901760
    %658 = vmatpush1.msra.mxu0 %v657
    %659 = vmatprep.subr.mxu0 0.0
    %v660 = vand.u32 %v49, 4294901760
    %v661 = vsub.f32 %v49, %v660
    %v662 = vand.u32 %v661, 4294901760
    %v663 = vsub.f32 %v661, %v662
    %v664 = vand.u32 %v663, 4294901760
    %665 = vmatpush1.msra.mxu0 %v664
    %666 = vmatprep.subr.mxu0 0.0
    %v667 = vand.u32 %v50, 4294901760
    %v668 = vsub.f32 %v50, %v667
    %v669 = vand.u32 %v668, 4294901760
    %v670 = vsub.f32 %v668, %v669
    %v671 = vand.u32 %v670, 4294901760
    %672 = vmatpush1.msra.mxu0 %v671
    %673 = vmatprep.subr.mxu0 0.0
    %v674 = vand.u32 %v51, 4294901760
    %v675 = vsub.f32 %v51, %v674
    %v676 = vand.u32 %v675, 4294901760
    %v677 = vsub.f32 %v675, %v676
    %v678 = vand.u32 %v677, 4294901760
    %679 = vmatpush1.msra.mxu0 %v678
    %680 = vmatprep.subr.mxu0 0.0
    %v681 = vand.u32 %v52, 4294901760
    %v682 = vsub.f32 %v52, %v681
    %v683 = vand.u32 %v682, 4294901760
    %v684 = vsub.f32 %v682, %v683
    %v685 = vand.u32 %v684, 4294901760
    %686 = vmatpush1.msra.mxu0 %v685
    %687 = vmatprep.subr.mxu0 0.0
    %v688 = vand.u32 %v53, 4294901760
    %v689 = vsub.f32 %v53, %v688
    %v690 = vand.u32 %v689, 4294901760
    %v691 = vsub.f32 %v689, %v690
    %v692 = vand.u32 %v691, 4294901760
    %693 = vmatpush1.msra.mxu0 %v692
    %694 = vmatprep.subr.mxu0 0.0
    %v695 = vand.u32 %v54, 4294901760
    %v696 = vsub.f32 %v54, %v695
    %v697 = vand.u32 %v696, 4294901760
    %v698 = vsub.f32 %v696, %v697
    %v699 = vand.u32 %v698, 4294901760
    %700 = vmatpush1.msra.mxu0 %v699
    %701 = vmatprep.subr.mxu0 0.0
    %v702 = vand.u32 %v55, 4294901760
    %v703 = vsub.f32 %v55, %v702
    %v704 = vand.u32 %v703, 4294901760
    %v705 = vsub.f32 %v703, %v704
    %v706 = vand.u32 %v705, 4294901760
    %707 = vmatpush1.msra.mxu0 %v706
    %708 = vmatprep.subr.mxu0 0.0
    %v709 = vand.u32 %v56, 4294901760
    %v710 = vsub.f32 %v56, %v709
    %v711 = vand.u32 %v710, 4294901760
    %v712 = vsub.f32 %v710, %v711
    %v713 = vand.u32 %v712, 4294901760
    %714 = vmatpush1.msra.mxu0 %v713
    %715 = vmatprep.subr.mxu0 0.0
    %v716 = vand.u32 %v57, 4294901760
    %v717 = vsub.f32 %v57, %v716
    %v718 = vand.u32 %v717, 4294901760
    %v719 = vsub.f32 %v717, %v718
    %v720 = vand.u32 %v719, 4294901760
    %721 = vmatpush1.msra.mxu0 %v720
    %722 = vmatprep.subr.mxu0 0.0
    %v723 = vand.u32 %v58, 4294901760
    %v724 = vsub.f32 %v58, %v723
    %v725 = vand.u32 %v724, 4294901760
    %v726 = vsub.f32 %v724, %v725
    %v727 = vand.u32 %v726, 4294901760
    %728 = vmatpush1.msra.mxu0 %v727
    %729 = vmatprep.subr.mxu0 0.0
    %v730 = vand.u32 %v59, 4294901760
    %v731 = vsub.f32 %v59, %v730
    %v732 = vand.u32 %v731, 4294901760
    %v733 = vsub.f32 %v731, %v732
    %v734 = vand.u32 %v733, 4294901760
    %735 = vmatpush1.msra.mxu0 %v734
    %736 = vmatprep.subr.mxu0 0.0
    %737 = vmatpush1.msra.mxu0 0.0
    %738 = vmatprep.subr.mxu0 0.0
    %739 = vmatpush1.msra.mxu0 0.0
    %740 = vmatprep.subr.mxu0 0.0
    %741 = vmatpush1.msra.mxu0 0.0
    %742 = vmatprep.subr.mxu0 0.0
    %743 = vmatpush1.msra.mxu0 0.0
    %744 = vmatprep.subr.mxu0 0.0
    %745 = vmatpush1.msra.mxu0 0.0
    %746 = vmatprep.subr.mxu0 0.0
    %747 = vmatpush1.msra.mxu0 0.0
    %748 = vmatprep.subr.mxu0 0.0
    %749 = vmatpush1.msra.mxu0 0.0
    %750 = vmatprep.subr.mxu0 0.0
    %751 = vmatpush1.msra.mxu0 0.0
    %752 = vmatprep.subr.mxu0 0.0
    %753 = vmatpush1.msra.mxu0 0.0
    %754 = vmatprep.subr.mxu0 0.0
    %755 = vmatpush1.msra.mxu0 0.0
    %756 = vmatprep.subr.mxu0 0.0
    %757 = vmatpush1.msra.mxu0 0.0
    %758 = vmatprep.subr.mxu0 0.0
    %759 = vmatpush1.msra.mxu0 0.0
    %760 = vmatprep.subr.mxu0 0.0
    %761 = vmatpush1.msra.mxu0 0.0
    %762 = vmatprep.subr.mxu0 0.0
    %763 = vmatpush1.msra.mxu0 0.0
    %764 = vmatprep.subr.mxu0 0.0
    %765 = vmatpush1.msra.mxu0 0.0
    %766 = vmatprep.subr.mxu0 0.0
    %767 = vmatpush1.msra.mxu0 0.0
    %768 = vmatprep.mubr.f32.mxu0 0.0
    %v769 = vand.u32 %v528, 4294901760
    %770 = vmatmul.mubr.f32.gmra.mrb[0].mxu0 %v769
    %v771 = vpop.f32.mrb[0].mxu0
    %v772 = vadd.f32 %v621, %v771
    %v773 = vpop.f32.mrb[0].mxu0
    %774 = vdwg.mxu0
    %775 = vmatprep.subr.mxu0 0.0
    %v776 = vand.u32 %v44, 4294901760
    %v777 = vsub.f32 %v44, %v776
    %778 = vmatpush1.msra.mxu0 %v777
    %779 = vmatprep.subr.mxu0 0.0
    %v780 = vand.u32 %v45, 4294901760
    %v781 = vsub.f32 %v45, %v780
    %782 = vmatpush1.msra.mxu0 %v781
    %783 = vmatprep.subr.mxu0 0.0
    %v784 = vand.u32 %v46, 4294901760
    %v785 = vsub.f32 %v46, %v784
    %786 = vmatpush1.msra.mxu0 %v785
    %787 = vmatprep.subr.mxu0 0.0
    %v788 = vand.u32 %v47, 4294901760
    %v789 = vsub.f32 %v47, %v788
    %790 = vmatpush1.msra.mxu0 %v789
    %791 = vmatprep.subr.mxu0 0.0
    %v792 = vand.u32 %v48, 4294901760
    %v793 = vsub.f32 %v48, %v792
    %794 = vmatpush1.msra.mxu0 %v793
    %795 = vmatprep.subr.mxu0 0.0
    %v796 = vand.u32 %v49, 4294901760
    %v797 = vsub.f32 %v49, %v796
    %798 = vmatpush1.msra.mxu0 %v797
    %799 = vmatprep.subr.mxu0 0.0
    %v800 = vand.u32 %v50, 4294901760
    %v801 = vsub.f32 %v50, %v800
    %802 = vmatpush1.msra.mxu0 %v801
    %803 = vmatprep.subr.mxu0 0.0
    %v804 = vand.u32 %v51, 4294901760
    %v805 = vsub.f32 %v51, %v804
    %806 = vmatpush1.msra.mxu0 %v805
    %807 = vmatprep.subr.mxu0 0.0
    %v808 = vand.u32 %v52, 4294901760
    %v809 = vsub.f32 %v52, %v808
    %810 = vmatpush1.msra.mxu0 %v809
    %811 = vmatprep.subr.mxu0 0.0
    %v812 = vand.u32 %v53, 4294901760
    %v813 = vsub.f32 %v53, %v812
    %814 = vmatpush1.msra.mxu0 %v813
    %815 = vmatprep.subr.mxu0 0.0
    %v816 = vand.u32 %v54, 4294901760
    %v817 = vsub.f32 %v54, %v816
    %818 = vmatpush1.msra.mxu0 %v817
    %819 = vmatprep.subr.mxu0 0.0
    %v820 = vand.u32 %v55, 4294901760
    %v821 = vsub.f32 %v55, %v820
    %822 = vmatpush1.msra.mxu0 %v821
    %823 = vmatprep.subr.mxu0 0.0
    %v824 = vand.u32 %v56, 4294901760
    %v825 = vsub.f32 %v56, %v824
    %826 = vmatpush1.msra.mxu0 %v825
    %827 = vmatprep.subr.mxu0 0.0
    %v828 = vand.u32 %v57, 4294901760
    %v829 = vsub.f32 %v57, %v828
    %830 = vmatpush1.msra.mxu0 %v829
    %831 = vmatprep.subr.mxu0 0.0
    %v832 = vand.u32 %v58, 4294901760
    %v833 = vsub.f32 %v58, %v832
    %834 = vmatpush1.msra.mxu0 %v833
    %835 = vmatprep.subr.mxu0 0.0
    %v836 = vand.u32 %v59, 4294901760
    %v837 = vsub.f32 %v59, %v836
    %838 = vmatpush1.msra.mxu0 %v837
    %839 = vmatprep.subr.mxu0 0.0
    %840 = vmatpush1.msra.mxu0 0.0
    %841 = vmatprep.subr.mxu0 0.0
    %842 = vmatpush1.msra.mxu0 0.0
    %843 = vmatprep.subr.mxu0 0.0
    %844 = vmatpush1.msra.mxu0 0.0
    %845 = vmatprep.subr.mxu0 0.0
    %846 = vmatpush1.msra.mxu0 0.0
    %847 = vmatprep.subr.mxu0 0.0
    %848 = vmatpush1.msra.mxu0 0.0
    %849 = vmatprep.subr.mxu0 0.0
    %850 = vmatpush1.msra.mxu0 0.0
    %851 = vmatprep.subr.mxu0 0.0
    %852 = vmatpush1.msra.mxu0 0.0
    %853 = vmatprep.subr.mxu0 0.0
    %854 = vmatpush1.msra.mxu0 0.0
    %855 = vmatprep.subr.mxu0 0.0
    %856 = vmatpush1.msra.mxu0 0.0
    %857 = vmatprep.subr.mxu0 0.0
    %858 = vmatpush1.msra.mxu0 0.0
    %859 = vmatprep.subr.mxu0 0.0
    %860 = vmatpush1.msra.mxu0 0.0
    %861 = vmatprep.subr.mxu0 0.0
    %862 = vmatpush1.msra.mxu0 0.0
    %863 = vmatprep.subr.mxu0 0.0
    %864 = vmatpush1.msra.mxu0 0.0
    %865 = vmatprep.subr.mxu0 0.0
    %866 = vmatpush1.msra.mxu0 0.0
    %867 = vmatprep.subr.mxu0 0.0
    %868 = vmatpush1.msra.mxu0 0.0
    %869 = vmatprep.subr.mxu0 0.0
    %870 = vmatpush1.msra.mxu0 0.0
    %871 = vmatprep.mubr.f32.mxu0 0.0
    %v872 = vand.u32 %v528, 4294901760
    %v873 = vsub.f32 %v528, %v872
    %874 = vmatmul.mubr.f32.gmra.mrb[0].mxu0 %v873
    %v875 = vpop.f32.mrb[0].mxu0
    %v876 = vadd.f32 %v772, %v875
    %v877 = vpop.f32.mrb[0].mxu0
    %878 = vdwg.mxu0
    %879 = vmatprep.subr.mxu0 0.0
    %v880 = vand.u32 %v44, 4294901760
    %881 = vmatpush1.msra.mxu0 %v880
    %882 = vmatprep.subr.mxu0 0.0
    %v883 = vand.u32 %v45, 4294901760
    %884 = vmatpush1.msra.mxu0 %v883
    %885 = vmatprep.subr.mxu0 0.0
    %v886 = vand.u32 %v46, 4294901760
    %887 = vmatpush1.msra.mxu0 %v886
    %888 = vmatprep.subr.mxu0 0.0
    %v889 = vand.u32 %v47, 4294901760
    %890 = vmatpush1.msra.mxu0 %v889
    %891 = vmatprep.subr.mxu0 0.0
    %v892 = vand.u32 %v48, 4294901760
    %893 = vmatpush1.msra.mxu0 %v892
    %894 = vmatprep.subr.mxu0 0.0
    %v895 = vand.u32 %v49, 4294901760
    %896 = vmatpush1.msra.mxu0 %v895
    %897 = vmatprep.subr.mxu0 0.0
    %v898 = vand.u32 %v50, 4294901760
    %899 = vmatpush1.msra.mxu0 %v898
    %900 = vmatprep.subr.mxu0 0.0
    %v901 = vand.u32 %v51, 4294901760
    %902 = vmatpush1.msra.mxu0 %v901
    %903 = vmatprep.subr.mxu0 0.0
    %v904 = vand.u32 %v52, 4294901760
    %905 = vmatpush1.msra.mxu0 %v904
    %906 = vmatprep.subr.mxu0 0.0
    %v907 = vand.u32 %v53, 4294901760
    %908 = vmatpush1.msra.mxu0 %v907
    %909 = vmatprep.subr.mxu0 0.0
    %v910 = vand.u32 %v54, 4294901760
    %911 = vmatpush1.msra.mxu0 %v910
    %912 = vmatprep.subr.mxu0 0.0
    %v913 = vand.u32 %v55, 4294901760
    %914 = vmatpush1.msra.mxu0 %v913
    %915 = vmatprep.subr.mxu0 0.0
    %v916 = vand.u32 %v56, 4294901760
    %917 = vmatpush1.msra.mxu0 %v916
    %918 = vmatprep.subr.mxu0 0.0
    %v919 = vand.u32 %v57, 4294901760
    %920 = vmatpush1.msra.mxu0 %v919
    %921 = vmatprep.subr.mxu0 0.0
    %v922 = vand.u32 %v58, 4294901760
    %923 = vmatpush1.msra.mxu0 %v922
    %924 = vmatprep.subr.mxu0 0.0
    %v925 = vand.u32 %v59, 4294901760
    %926 = vmatpush1.msra.mxu0 %v925
    %927 = vmatprep.subr.mxu0 0.0
    %928 = vmatpush1.msra.mxu0 0.0
    %929 = vmatprep.subr.mxu0 0.0
    %930 = vmatpush1.msra.mxu0 0.0
    %931 = vmatprep.subr.mxu0 0.0
    %932 = vmatpush1.msra.mxu0 0.0
    %933 = vmatprep.subr.mxu0 0.0
    %934 = vmatpush1.msra.mxu0 0.0
    %935 = vmatprep.subr.mxu0 0.0
    %936 = vmatpush1.msra.mxu0 0.0
    %937 = vmatprep.subr.mxu0 0.0
    %938 = vmatpush1.msra.mxu0 0.0
    %939 = vmatprep.subr.mxu0 0.0
    %940 = vmatpush1.msra.mxu0 0.0
    %941 = vmatprep.subr.mxu0 0.0
    %942 = vmatpush1.msra.mxu0 0.0
    %943 = vmatprep.subr.mxu0 0.0
    %944 = vmatpush1.msra.mxu0 0.0
    %945 = vmatprep.subr.mxu0 0.0
    %946 = vmatpush1.msra.mxu0 0.0
    %947 = vmatprep.subr.mxu0 0.0
    %948 = vmatpush1.msra.mxu0 0.0
    %949 = vmatprep.subr.mxu0 0.0
    %950 = vmatpush1.msra.mxu0 0.0
    %951 = vmatprep.subr.mxu0 0.0
    %952 = vmatpush1.msra.mxu0 0.0
    %953 = vmatprep.subr.mxu0 0.0
    %954 = vmatpush1.msra.mxu0 0.0
    %955 = vmatprep.subr.mxu0 0.0
    %956 = vmatpush1.msra.mxu0 0.0
    %957 = vmatprep.subr.mxu0 0.0
    %958 = vmatpush1.msra.mxu0 0.0
    %959 = vmatprep.mubr.f32.mxu0 0.0
    %v960 = vand.u32 %v528, 4294901760
    %v961 = vsub.f32 %v528, %v960
    %v962 = vand.u32 %v961, 4294901760
    %963 = vmatmul.mubr.f32.gmra.mrb[0].mxu0 %v962
    %v964 = vpop.f32.mrb[0].mxu0
    %v965 = vadd.f32 %v876, %v964
    %v966 = vpop.f32.mrb[0].mxu0
    %967 = vdwg.mxu0
    %968 = vmatprep.subr.mxu0 0.0
    %v969 = vand.u32 %v44, 4294901760
    %v970 = vsub.f32 %v44, %v969
    %v971 = vand.u32 %v970, 4294901760
    %972 = vmatpush1.msra.mxu0 %v971
    %973 = vmatprep.subr.mxu0 0.0
    %v974 = vand.u32 %v45, 4294901760
    %v975 = vsub.f32 %v45, %v974
    %v976 = vand.u32 %v975, 4294901760
    %977 = vmatpush1.msra.mxu0 %v976
    %978 = vmatprep.subr.mxu0 0.0
    %v979 = vand.u32 %v46, 4294901760
    %v980 = vsub.f32 %v46, %v979
    %v981 = vand.u32 %v980, 4294901760
    %982 = vmatpush1.msra.mxu0 %v981
    %983 = vmatprep.subr.mxu0 0.0
    %v984 = vand.u32 %v47, 4294901760
    %v985 = vsub.f32 %v47, %v984
    %v986 = vand.u32 %v985, 4294901760
    %987 = vmatpush1.msra.mxu0 %v986
    %988 = vmatprep.subr.mxu0 0.0
    %v989 = vand.u32 %v48, 4294901760
    %v990 = vsub.f32 %v48, %v989
    %v991 = vand.u32 %v990, 4294901760
    %992 = vmatpush1.msra.mxu0 %v991
    %993 = vmatprep.subr.mxu0 0.0
    %v994 = vand.u32 %v49, 4294901760
    %v995 = vsub.f32 %v49, %v994
    %v996 = vand.u32 %v995, 4294901760
    %997 = vmatpush1.msra.mxu0 %v996
    %998 = vmatprep.subr.mxu0 0.0
    %v999 = vand.u32 %v50, 4294901760
    %v1000 = vsub.f32 %v50, %v999
    %v1001 = vand.u32 %v1000, 4294901760
    %1002 = vmatpush1.msra.mxu0 %v1001
    %1003 = vmatprep.subr.mxu0 0.0
    %v1004 = vand.u32 %v51, 4294901760
    %v1005 = vsub.f32 %v51, %v1004
    %v1006 = vand.u32 %v1005, 4294901760
    %1007 = vmatpush1.msra.mxu0 %v1006
    %1008 = vmatprep.subr.mxu0 0.0
    %v1009 = vand.u32 %v52, 4294901760
    %v1010 = vsub.f32 %v52, %v1009
    %v1011 = vand.u32 %v1010, 4294901760
    %1012 = vmatpush1.msra.mxu0 %v1011
    %1013 = vmatprep.subr.mxu0 0.0
    %v1014 = vand.u32 %v53, 4294901760
    %v1015 = vsub.f32 %v53, %v1014
    %v1016 = vand.u32 %v1015, 4294901760
    %1017 = vmatpush1.msra.mxu0 %v1016
    %1018 = vmatprep.subr.mxu0 0.0
    %v1019 = vand.u32 %v54, 4294901760
    %v1020 = vsub.f32 %v54, %v1019
    %v1021 = vand.u32 %v1020, 4294901760
    %1022 = vmatpush1.msra.mxu0 %v1021
    %1023 = vmatprep.subr.mxu0 0.0
    %v1024 = vand.u32 %v55, 4294901760
    %v1025 = vsub.f32 %v55, %v1024
    %v1026 = vand.u32 %v1025, 4294901760
    %1027 = vmatpush1.msra.mxu0 %v1026
    %1028 = vmatprep.subr.mxu0 0.0
    %v1029 = vand.u32 %v56, 4294901760
    %v1030 = vsub.f32 %v56, %v1029
    %v1031 = vand.u32 %v1030, 4294901760
    %1032 = vmatpush1.msra.mxu0 %v1031
    %1033 = vmatprep.subr.mxu0 0.0
    %v1034 = vand.u32 %v57, 4294901760
    %v1035 = vsub.f32 %v57, %v1034
    %v1036 = vand.u32 %v1035, 4294901760
    %1037 = vmatpush1.msra.mxu0 %v1036
    %1038 = vmatprep.subr.mxu0 0.0
    %v1039 = vand.u32 %v58, 4294901760
    %v1040 = vsub.f32 %v58, %v1039
    %v1041 = vand.u32 %v1040, 4294901760
    %1042 = vmatpush1.msra.mxu0 %v1041
    %1043 = vmatprep.subr.mxu0 0.0
    %v1044 = vand.u32 %v59, 4294901760
    %v1045 = vsub.f32 %v59, %v1044
    %v1046 = vand.u32 %v1045, 4294901760
    %1047 = vmatpush1.msra.mxu0 %v1046
    %1048 = vmatprep.subr.mxu0 0.0
    %1049 = vmatpush1.msra.mxu0 0.0
    %1050 = vmatprep.subr.mxu0 0.0
    %1051 = vmatpush1.msra.mxu0 0.0
    %1052 = vmatprep.subr.mxu0 0.0
    %1053 = vmatpush1.msra.mxu0 0.0
    %1054 = vmatprep.subr.mxu0 0.0
    %1055 = vmatpush1.msra.mxu0 0.0
    %1056 = vmatprep.subr.mxu0 0.0
    %1057 = vmatpush1.msra.mxu0 0.0
    %1058 = vmatprep.subr.mxu0 0.0
    %1059 = vmatpush1.msra.mxu0 0.0
    %1060 = vmatprep.subr.mxu0 0.0
    %1061 = vmatpush1.msra.mxu0 0.0
    %1062 = vmatprep.subr.mxu0 0.0
    %1063 = vmatpush1.msra.mxu0 0.0
    %1064 = vmatprep.subr.mxu0 0.0
    %1065 = vmatpush1.msra.mxu0 0.0
    %1066 = vmatprep.subr.mxu0 0.0
    %1067 = vmatpush1.msra.mxu0 0.0
    %1068 = vmatprep.subr.mxu0 0.0
    %1069 = vmatpush1.msra.mxu0 0.0
    %1070 = vmatprep.subr.mxu0 0.0
    %1071 = vmatpush1.msra.mxu0 0.0
    %1072 = vmatprep.subr.mxu0 0.0
    %1073 = vmatpush1.msra.mxu0 0.0
    %1074 = vmatprep.subr.mxu0 0.0
    %1075 = vmatpush1.msra.mxu0 0.0
    %1076 = vmatprep.subr.mxu0 0.0
    %1077 = vmatpush1.msra.mxu0 0.0
    %1078 = vmatprep.subr.mxu0 0.0
    %1079 = vmatpush1.msra.mxu0 0.0
    %1080 = vmatprep.mubr.f32.mxu0 0.0
    %v1081 = vand.u32 %v528, 4294901760
    %1082 = vmatmul.mubr.f32.gmra.mrb[0].mxu0 %v1081
    %v1083 = vpop.f32.mrb[0].mxu0
    %v1084 = vadd.f32 %v965, %v1083
    %v1085 = vpop.f32.mrb[0].mxu0
    %1086 = vdwg.mxu0
    %1087 = vmatprep.subr.mxu0 0.0
    %v1088 = vand.u32 %v44, 4294901760
    %1089 = vmatpush1.msra.mxu0 %v1088
    %1090 = vmatprep.subr.mxu0 0.0
    %v1091 = vand.u32 %v45, 4294901760
    %1092 = vmatpush1.msra.mxu0 %v1091
    %1093 = vmatprep.subr.mxu0 0.0
    %v1094 = vand.u32 %v46, 4294901760
    %1095 = vmatpush1.msra.mxu0 %v1094
    %1096 = vmatprep.subr.mxu0 0.0
    %v1097 = vand.u32 %v47, 4294901760
    %1098 = vmatpush1.msra.mxu0 %v1097
    %1099 = vmatprep.subr.mxu0 0.0
    %v1100 = vand.u32 %v48, 4294901760
    %1101 = vmatpush1.msra.mxu0 %v1100
    %1102 = vmatprep.subr.mxu0 0.0
    %v1103 = vand.u32 %v49, 4294901760
    %1104 = vmatpush1.msra.mxu0 %v1103
    %1105 = vmatprep.subr.mxu0 0.0
    %v1106 = vand.u32 %v50, 4294901760
    %1107 = vmatpush1.msra.mxu0 %v1106
    %1108 = vmatprep.subr.mxu0 0.0
    %v1109 = vand.u32 %v51, 4294901760
    %1110 = vmatpush1.msra.mxu0 %v1109
    %1111 = vmatprep.subr.mxu0 0.0
    %v1112 = vand.u32 %v52, 4294901760
    %1113 = vmatpush1.msra.mxu0 %v1112
    %1114 = vmatprep.subr.mxu0 0.0
    %v1115 = vand.u32 %v53, 4294901760
    %1116 = vmatpush1.msra.mxu0 %v1115
    %1117 = vmatprep.subr.mxu0 0.0
    %v1118 = vand.u32 %v54, 4294901760
    %1119 = vmatpush1.msra.mxu0 %v1118
    %1120 = vmatprep.subr.mxu0 0.0
    %v1121 = vand.u32 %v55, 4294901760
    %1122 = vmatpush1.msra.mxu0 %v1121
    %1123 = vmatprep.subr.mxu0 0.0
    %v1124 = vand.u32 %v56, 4294901760
    %1125 = vmatpush1.msra.mxu0 %v1124
    %1126 = vmatprep.subr.mxu0 0.0
    %v1127 = vand.u32 %v57, 4294901760
    %1128 = vmatpush1.msra.mxu0 %v1127
    %1129 = vmatprep.subr.mxu0 0.0
    %v1130 = vand.u32 %v58, 4294901760
    %1131 = vmatpush1.msra.mxu0 %v1130
    %1132 = vmatprep.subr.mxu0 0.0
    %v1133 = vand.u32 %v59, 4294901760
    %1134 = vmatpush1.msra.mxu0 %v1133
    %1135 = vmatprep.subr.mxu0 0.0
    %1136 = vmatpush1.msra.mxu0 0.0
    %1137 = vmatprep.subr.mxu0 0.0
    %1138 = vmatpush1.msra.mxu0 0.0
    %1139 = vmatprep.subr.mxu0 0.0
    %1140 = vmatpush1.msra.mxu0 0.0
    %1141 = vmatprep.subr.mxu0 0.0
    %1142 = vmatpush1.msra.mxu0 0.0
    %1143 = vmatprep.subr.mxu0 0.0
    %1144 = vmatpush1.msra.mxu0 0.0
    %1145 = vmatprep.subr.mxu0 0.0
    %1146 = vmatpush1.msra.mxu0 0.0
    %1147 = vmatprep.subr.mxu0 0.0
    %1148 = vmatpush1.msra.mxu0 0.0
    %1149 = vmatprep.subr.mxu0 0.0
    %1150 = vmatpush1.msra.mxu0 0.0
    %1151 = vmatprep.subr.mxu0 0.0
    %1152 = vmatpush1.msra.mxu0 0.0
    %1153 = vmatprep.subr.mxu0 0.0
    %1154 = vmatpush1.msra.mxu0 0.0
    %1155 = vmatprep.subr.mxu0 0.0
    %1156 = vmatpush1.msra.mxu0 0.0
    %1157 = vmatprep.subr.mxu0 0.0
    %1158 = vmatpush1.msra.mxu0 0.0
    %1159 = vmatprep.subr.mxu0 0.0
    %1160 = vmatpush1.msra.mxu0 0.0
    %1161 = vmatprep.subr.mxu0 0.0
    %1162 = vmatpush1.msra.mxu0 0.0
    %1163 = vmatprep.subr.mxu0 0.0
    %1164 = vmatpush1.msra.mxu0 0.0
    %1165 = vmatprep.subr.mxu0 0.0
    %1166 = vmatpush1.msra.mxu0 0.0
    %1167 = vmatprep.mubr.f32.mxu0 0.0
    %v1168 = vand.u32 %v528, 4294901760
    %1169 = vmatmul.mubr.f32.gmra.mrb[0].mxu0 %v1168
    %v1170 = vpop.f32.mrb[0].mxu0
    %v1171 = vadd.f32 %v1084, %v1170
    %v1172 = vpop.f32.mrb[0].mxu0
    %1173 = vdwg.mxu0
    %1174 = vst [vmem:[#allocation7] sm:$0xff] %v1171
    // Predicated region
    $region18: #{forward.1} parent=1 // pred_check
      _
    $region19: #{forward.1} parent=1 // pred_check_branch
      %1176 = sbr.rel (0) target = $region21
    $region20: #{forward.1} parent=1 // pred_region
      %s1178 = ssub.s32 128, 32
      %1179 = vsyncadd [#allocation4], %s1178
      %s1180 = sshll.u32 [#allocation7], 4
      %s1181 = int_to_ptr.vmem [resolvable:$true] %s1180
      %1186 = dma.vmem_to_hbm [thread:$0]  %s1181, 32, %s2, [#allocation4], 32, 32, 2
    $region21: #{forward.1} parent=1 // pred_fallthru
      _
    // Predicated region
    $region22: #{forward.1} parent=1 // pred_check
      _
    $region23: #{forward.1} parent=1 // pred_check_branch
      %1188 = sbr.rel (0) target = $region25
    $region24: #{forward.1} parent=1 // pred_region
      %1189 = dma.done [#allocation4], 128
    $region25: #{forward.1} parent=1 // pred_fallthru
      _
    %1190 = vsyncpa [#allocation3], 1
    %1191 = vsyncpa [#allocation6], 1
    %1192 = vsyncpa [#allocation4], 1

</llo_original>
